<compile_context>
chip_gen: v6e
topology: v6e:2x2x1
jax: 0.10.0
libtpu: 0.0.40
codegen_flags: <defaults>
</compile_context>

<pallas_src>
import math

import jax
import jax.numpy as jnp
from jax.experimental import pallas as pl
from jax.experimental.pallas import tpu as pltpu


_LANE = 128        # TPU lane width: last dim of every block (unmasked stores)
_MAX_ROWS = 512    # sublane rows per grid step: 512*128*4B = 256 KiB per half


# ---------------------------------------------------------------------------
# Pallas kernel
# ---------------------------------------------------------------------------

def _foldcut_kernel(x_ref, o_ref):
    # x_ref: (2, TM, 128) -- matching row-tiles of the two halves
    # o_ref: (TM, 128)
    o_ref[...] = x_ref[0] + x_ref[1]


# ---------------------------------------------------------------------------
# Wrapper
# ---------------------------------------------------------------------------

def foldcut(x, dimension=0):
    """Equivalent of Foldcut(dimension).forward(x): chunk(2, dim) then add."""
    d = dimension % x.ndim
    if x.shape[d] % 2 != 0:
        raise ValueError("Foldcut: size along the chunk dimension must be even")

    # Move chunk dim to the front (no-op for the default dimension=0), then
    # flatten each half into one contiguous row-major vector.
    xm = jnp.moveaxis(x, d, 0)
    half_shape = (xm.shape[0] // 2,) + xm.shape[1:]
    n = math.prod(half_shape)                       # elements per half
    x2 = xm.reshape(2, n)                           # [0]=first half, [1]=second

    # Lane-dense layout: (2, rows, 128) with rows padded to a sublane multiple
    # and to the row-tile size so the grid divides exactly.
    rows = pl.cdiv(n, _LANE)
    rows8 = pl.cdiv(rows, 8) * 8
    tm = min(_MAX_ROWS, rows8)
    rows_pad = pl.cdiv(rows8, tm) * tm
    n_pad = rows_pad * _LANE
    if n_pad != n:
        x2 = jnp.pad(x2, ((0, 0), (0, n_pad - n)))  # zeros: 0+0=0, sliced off later
    x3 = x2.reshape(2, rows_pad, _LANE)

    out = pl.pallas_call(
        _foldcut_kernel,
        out_shape=jax.ShapeDtypeStruct((rows_pad, _LANE), x.dtype),
        grid=(rows_pad // tm,),
        in_specs=[pl.BlockSpec((2, tm, _LANE), lambda i: (0, i, 0))],
        out_specs=pl.BlockSpec((tm, _LANE), lambda i: (i, 0)),
        compiler_params=pltpu.CompilerParams(
            dimension_semantics=("parallel",)),
    )(x3)

    out = out.reshape(n_pad)[:n].reshape(half_shape)
    return jnp.moveaxis(out, 0, d)


# ---------------------------------------------------------------------------
# Pure-JAX reference
# ---------------------------------------------------------------------------

def foldcut_ref(x, dimension=0):
    x1, x2 = jnp.split(x, 2, axis=dimension)
    return x1 + x2


# ---------------------------------------------------------------------------

if __name__ == "__main__":
    key = jax.random.PRNGKey(0)
    k1, k2 = jax.random.split(key)

    # Small shape consistent with the module: chunk along dim 0 (the default).
    x = jax.random.normal(k1, (2, 4, 16, 16), jnp.float32)
    out = jax.block_until_ready(foldcut(x, dimension=0))
    ref = foldcut_ref(x, dimension=0)
    assert out.shape == (1, 4, 16, 16), out.shape
    assert jnp.allclose(out, ref, rtol=1e-6, atol=1e-6), float(jnp.max(jnp.abs(out - ref)))

    # Larger, non-aligned case: exercises the tiled grid + padding path and a
    # non-default chunk dimension.
    y = jax.random.normal(k2, (3, 8, 37, 53), jnp.float32)
    out2 = jax.block_until_ready(foldcut(y, dimension=1))
    ref2 = foldcut_ref(y, dimension=1)
    assert out2.shape == (3, 4, 37, 53), out2.shape
    assert jnp.allclose(out2, ref2, rtol=1e-6, atol=1e-6), float(jnp.max(jnp.abs(out2 - ref2)))

    print("KERNEL_OK")
</pallas_src>

<mosaic_0001>
module attributes {stable_mosaic.version = 11 : i64} {
  func.func @_foldcut_kernel(%arg0: i32, %arg1: memref<2x8x128xf32, #tpu.memory_space<vmem>>, %arg2: memref<8x128xf32, #tpu.memory_space<vmem>>) attributes {dimension_semantics = [#tpu.dimension_semantics<parallel>], iteration_bounds = array<i64: 1>, scalar_prefetch = 0 : i64, scratch_operands = 0 : i64, tpu.core_type = #tpu.core_type<tc>, window_params = [{transform_indices = @transform_0, window_bounds = array<i64: 2, 8, 128>}, {transform_indices = @transform_1, window_bounds = array<i64: 8, 128>}]} {
    %c0 = arith.constant 0 : index
    %c0_0 = arith.constant 0 : index
    %c0_1 = arith.constant 0 : index
    %0 = vector.load %arg1[%c0, %c0_0, %c0_1] : memref<2x8x128xf32, #tpu.memory_space<vmem>>, vector<1x8x128xf32>
    %1 = vector.shape_cast %0 : vector<1x8x128xf32> to vector<8x128xf32>
    %c1 = arith.constant 1 : index
    %c0_2 = arith.constant 0 : index
    %c0_3 = arith.constant 0 : index
    %2 = vector.load %arg1[%c1, %c0_2, %c0_3] : memref<2x8x128xf32, #tpu.memory_space<vmem>>, vector<1x8x128xf32>
    %3 = vector.shape_cast %2 : vector<1x8x128xf32> to vector<8x128xf32>
    %4 = arith.addf %1, %3 : vector<8x128xf32>
    %c0_4 = arith.constant 0 : index
    %c0_5 = arith.constant 0 : index
    %5 = vector.load %arg2[%c0_4, %c0_5] : memref<8x128xf32, #tpu.memory_space<vmem>>, vector<8x128xf32>
    tpu.vector_store %arg2[%c0_4, %c0_5], %4 {strides = array<i32>} : memref<8x128xf32, #tpu.memory_space<vmem>>, vector<8x128xf32>,
    return
  }
  func.func @transform_0(%arg0: i32) -> (i32, i32, i32) {
    %c0_i32 = arith.constant 0 : i32
    %c0_i32_0 = arith.constant 0 : i32
    %c0_i32_1 = arith.constant 0 : i32
    return %c0_i32, %arg0, %c0_i32_0 : i32, i32, i32
  }
  func.func @transform_1(%arg0: i32) -> (i32, i32) {
    %c0_i32 = arith.constant 0 : i32
    %c0_i32_0 = arith.constant 0 : i32
    return %arg0, %c0_i32 : i32, i32
  }
}

</mosaic_0001>

<llo_original>
// kernel: tpu_custom_call.1
$region0: #{tpu_custom_call.1}
  #allocation0 [shape = 'u32[]', space=smem, size = 0x4, offset = 0x4, fixed_abs, tag = 'smem constant byte address 0x4 - core index']
  #allocation1 [shape = 'u32[144,128]{1,0:T(1,128)}', space=vmem, size = 0x12000, scoped, tag = 'internal scratch']
  %s0 = inlined_call_operand.hbm [shape: f32[2,8,128], index: 0, kind: input, shape index: {}]
  %s1 = inlined_call_operand.hbm [shape: f32[8,128], index: 1, kind: output, shape index: {}]
  %s2 = sld [smem:[#allocation0]]
  $region18: #{tpu_custom_call.1} parent=0
    _
  %s4 = ssub.s32 1, %s2
  %s5 = scalar_select 0, %s4, %s2
  $region1: #{tpu_custom_call.1} parent=0
    #allocation2 [shape = 'u8[8192]{0}', space=vmem, size = 0x2000, scoped, tag = 'input window, operand 0, single buffered']
    #allocation3 [shape = 's32[1]{0}', space=sflag, size = 0x4, scoped, tag = 'scoped memory for tpu_custom_call.1']
    #allocation4 [shape = 's32[1]{0}', space=sflag, size = 0x4, scoped, tag = 'scoped memory for tpu_custom_call.1']
    #allocation5 [shape = 'u8[4096]{0}', space=vmem, size = 0x1000, scoped, tag = 'output window, operand 0, single buffered']
    %6 = vsyncpa [#allocation3], 0
    %7 = vsyncpa [#allocation4], 0
    // Predicated region
    $region2: #{tpu_custom_call.1} parent=1 // pred_check
      _
    $region3: #{tpu_custom_call.1} parent=1 // pred_check_branch
      %9 = sbr.rel (0) target = $region5
    $region4: #{tpu_custom_call.1} parent=1 // pred_region
      %s11 = ssub.s32 256, 256
      %12 = vsyncadd [#allocation3], %s11
      %s13 = sshll.u32 [#allocation2], 4
      %s14 = int_to_ptr.vmem [resolvable:$true] %s13
      %19 = dma.hbm_to_vmem [thread:$0]  %s0, 256, %s14, [#allocation3], 128, 128, 8
    $region5: #{tpu_custom_call.1} parent=1 // pred_fallthru
      _
    // Predicated region
    $region6: #{tpu_custom_call.1} parent=1 // pred_check
      _
    $region7: #{tpu_custom_call.1} parent=1 // pred_check_branch
      %21 = sbr.rel (0) target = $region9
    $region8: #{tpu_custom_call.1} parent=1 // pred_region
      %22 = dma.done [#allocation3], 256
    $region9: #{tpu_custom_call.1} parent=1 // pred_fallthru
      _
    %v23 = vld [vmem:[#allocation2] sm:$0xff]
    %s24 = scalar_lea.vmem [#allocation2], 8
    %v25 = vld [vmem:[%s24] sm:$0xff]
    %v26 = vadd.f32 %v23, %v25
    %27 = vst [vmem:[#allocation5] sm:$0xff] %v26
    // Predicated region
    $region10: #{tpu_custom_call.1} parent=1 // pred_check
      _
    $region11: #{tpu_custom_call.1} parent=1 // pred_check_branch
      %29 = sbr.rel (0) target = $region13
    $region12: #{tpu_custom_call.1} parent=1 // pred_region
      %s31 = ssub.s32 128, 128
      %32 = vsyncadd [#allocation4], %s31
      %s34 = sshll.u32 [#allocation5], 4
      %s35 = int_to_ptr.vmem [resolvable:$true] %s34
      %37 = dma.vmem_to_hbm [thread:$0]  %s35, 128, %s1, [#allocation4]
    $region13: #{tpu_custom_call.1} parent=1 // pred_fallthru
      _
    // Predicated region
    $region14: #{tpu_custom_call.1} parent=1 // pred_check
      _
    $region15: #{tpu_custom_call.1} parent=1 // pred_check_branch
      %39 = sbr.rel (0) target = $region17
    $region16: #{tpu_custom_call.1} parent=1 // pred_region
      %40 = dma.done [#allocation4], 128
    $region17: #{tpu_custom_call.1} parent=1 // pred_fallthru
      _
    %41 = vsyncpa [#allocation3], 1
    %42 = vsyncpa [#allocation4], 1

</llo_original>
